<compile_context>
chip_gen: v5e
topology: v5e:2x2
jax: 0.10.0
libtpu: 0.0.40
codegen_flags: <defaults>
</compile_context>

<pallas_src>
import functools

import jax
import jax.numpy as jnp
from jax.experimental import pallas as pl
from jax.experimental.pallas import tpu as pltpu

_LANE = 128      # lane width (last dim)
_SUBLANE = 8     # sublane width (second-to-last dim, f32)


def _round_up(x, m):
    return ((x + m - 1) // m) * m


def _vmem_ceiling_bytes():
    """Generation-aware VMEM ceiling: ~85% of physical (≈54 MiB v7x, ≈108 MiB v5e/v6e)."""
    try:
        cap = int(pltpu.get_tpu_info().vmem_capacity_bytes)
    except Exception:
        cap = 64 * 1024 * 1024   # conservative (v7x per-TC) if the query is unavailable
    return int(cap * 0.85)


def _block_spec(shape, index_map, buffers=None):
    """BlockSpec with an optional pipeline buffer count (graceful fallback)."""
    if buffers is None:
        return pl.BlockSpec(shape, index_map)
    try:
        return pl.BlockSpec(shape, index_map, pipeline_mode=pl.Buffered(buffers))
    except TypeError:  # jax build without the pipeline_mode kwarg
        return pl.BlockSpec(shape, index_map)


def _choose_tile(n, tile_m, row_pack):
    """Largest row tile <= tile_m with bounded (<=12.5%) row over-padding."""
    tile_m = max(row_pack, _round_up(tile_m, row_pack))
    tile = min(tile_m, _round_up(n, row_pack))
    n_pad = _round_up(n, tile)
    while tile > row_pack and (n_pad - n) * 8 > n_pad:
        tile = max(row_pack, _round_up(tile // 2, row_pack))
        n_pad = _round_up(n, tile)
    return tile, n_pad


def _fused_mlp_kernel(alpha_ref, x_ref, *refs, num_layers):
    """Whole MLP on one VMEM row tile.

    refs = (w_0, b_0, ..., w_{L-1}, b_{L-1}, out_ref). Weights/biases are
    grid-invariant VMEM-resident blocks; only the row tile changes per step.
    """
    o_ref = refs[2 * num_layers]
    alpha = alpha_ref[0]                        # PReLU slope from SMEM (scalar path)

    h = x_ref[...]
    for li in range(num_layers):
        w_ref = refs[2 * li]
        b_ref = refs[2 * li + 1]
        # MXU matmul, f32 accumulation regardless of compute dtype.
        y = jnp.dot(h, w_ref[...], preferred_element_type=jnp.float32)
        y = y + b_ref[...]                      # bias (1, d_out) broadcasts over rows
        if li < num_layers - 1:
            y = jnp.where(y > 0, y, alpha * y)  # PReLU in f32 on the VPU
            h = y.astype(x_ref.dtype)           # back to compute dtype for next MXU pass
        else:
            o_ref[...] = y.astype(o_ref.dtype)  # lane-dense (d_out padded to 128) store


def xavier_uniform(key, shape, gain):
    """Matches torch.nn.init.xavier_uniform_ for a Linear weight of shape (fan_out, fan_in)."""
    fan_out, fan_in = shape
    limit = gain * jnp.sqrt(6.0 / (fan_in + fan_out))
    return jax.random.uniform(key, shape, jnp.float32, -limit, limit)


def init_homo_propagate_params(key, num_layers, feat_dim, hidden_dim, output_dim, prop_steps):
    """Deterministic parameter init mirroring HomoPropagateModel.reset_parameters()."""
    gain = jnp.sqrt(2.0)  # nn.init.calculate_gain('relu')
    in_dims = [(prop_steps + 1) * feat_dim] + [hidden_dim] * (num_layers - 1)
    out_dims = [hidden_dim] * (num_layers - 1) + [output_dim]
    params = []
    for li in range(num_layers):
        key, sub = jax.random.split(key)
        w_torch = xavier_uniform(sub, (out_dims[li], in_dims[li]), gain)  # (out, in) like torch
        w = jnp.transpose(w_torch)                                        # stored as (in, out)
        b = jnp.zeros((out_dims[li],), jnp.float32)
        params.append((w, b))
    prelu_alpha = jnp.float32(0.25)  # nn.PReLU default init
    return params, prelu_alpha


def prepare_params(params, prelu_alpha, *, compute_dtype=jnp.float32, out_dtype=jnp.float32):
    """One-time lane padding (multiples of 128) + dtype cast of the MLP parameters.

    compute_dtype=jnp.bfloat16 halves x/W HBM traffic and VMEM footprint on ALL
    generations (the v5e MXU is bf16-native too); bias add, PReLU and MXU
    accumulation remain f32 inside the kernel.  out_dtype=jnp.bfloat16 additionally
    halves logits writeback if the downstream consumer (argmax / bf16 loss)
    tolerates it.
    """
    weights, biases = [], []
    for (w, b) in params:
        d_in, d_out = w.shape
        d_in_p = _round_up(d_in, _LANE)
        d_out_p = _round_up(d_out, _LANE)
        w_p = jnp.zeros((d_in_p, d_out_p), compute_dtype).at[:d_in, :d_out].set(
            w.astype(compute_dtype))
        b_p = jnp.zeros((1, d_out_p), jnp.float32).at[0, :d_out].set(b.astype(jnp.float32))
        weights.append(w_p)
        biases.append(b_p)
    return dict(
        weights=weights,
        biases=biases,
        alpha=jnp.asarray(prelu_alpha, jnp.float32).reshape(1),
        in_dim=params[0][0].shape[0],
        out_dim=params[-1][0].shape[1],
        compute_dtype=compute_dtype,
        out_dtype=out_dtype,
    )


def prepare_input(prepared, smoothed_feature, *, tile_m=512):
    """One-time row/lane padding + dtype cast of X (hoisted out of the forward call).

    In AdaFGL the smoothed feature matrix is fixed across epochs, so paying this
    full HBM read+write once (instead of once per forward) removes an entire extra
    pass over the largest tensor.
    """
    compute_dtype = prepared["compute_dtype"]
    n, d_in = smoothed_feature.shape
    assert d_in == prepared["in_dim"]
    d_in_pad = prepared["weights"][0].shape[0]
    dsize = jnp.dtype(compute_dtype).itemsize
    row_pack = 16 if dsize == 2 else _SUBLANE      # bf16 packs 2 rows per sublane
    tile, n_pad = _choose_tile(n, tile_m, row_pack)

    x = smoothed_feature.astype(compute_dtype)
    if (n_pad, d_in_pad) != (n, d_in):
        x = jnp.zeros((n_pad, d_in_pad), compute_dtype).at[:n, :d_in].set(x)
    return dict(x=x, n=n, n_pad=n_pad, tile=tile)


def homo_propagate_forward(prepared, x_prepared, global_logits, *, tile_m=512, x_buffers=None):
    """Pallas implementation of HomoPropagateModel.forward (bn=ln=False, dropout=eval/identity).

    x_prepared: dict from prepare_input() (preferred), or a raw (n, d_in) array
    (convenience path that pads/casts on the fly).
    x_buffers: optional pipeline depth for the x/out row tiles (e.g. 3 on v7x when
    hidden dims are small and per-tile compute is short relative to the tile DMA).
    """
    # TODO(synk): train-mode nn.Dropout(0.5) (stochastic mask) is not implemented; eval semantics only.
    if not isinstance(x_prepared, dict):
        x_prepared = prepare_input(prepared, x_prepared, tile_m=tile_m)

    weights = prepared["weights"]
    biases = prepared["biases"]
    compute_dtype = prepared["compute_dtype"]
    out_dtype = prepared["out_dtype"]
    num_layers = len(weights)

    x = x_prepared["x"]
    n, n_pad, tile = x_prepared["n"], x_prepared["n_pad"], x_prepared["tile"]
    d_in_pad = weights[0].shape[0]
    d_out_pad = weights[-1].shape[1]
    assert x.shape == (n_pad, d_in_pad)

    dsize = jnp.dtype(compute_dtype).itemsize
    out_dsize = jnp.dtype(out_dtype).itemsize

    flat_params = []
    in_specs = [
        pl.BlockSpec(memory_space=pltpu.MemorySpace.SMEM),                    # PReLU alpha (scalar path)
        _block_spec((tile, d_in_pad), lambda i: (i, 0), buffers=x_buffers),   # x row tile
    ]
    for w, b in zip(weights, biases):
        flat_params.extend([w, b])
        # Grid-invariant, VMEM-resident params: single-buffered (double-buffering a
        # constant block only doubles resident VMEM).
        in_specs.append(_block_spec(w.shape, lambda i: (0, 0), buffers=1))
        in_specs.append(_block_spec(b.shape, lambda i: (0, 0), buffers=1))
    out_spec = _block_spec((tile, d_out_pad), lambda i: (i, 0), buffers=x_buffers)

    w_bytes = sum(w.size * dsize for w in weights)
    b_bytes = sum(b.size * 4 for b in biases)
    flops = 2 * n_pad * sum(w.shape[0] * w.shape[1] for w in weights)
    bytes_accessed = x.size * dsize + w_bytes + b_bytes + n_pad * d_out_pad * out_dsize

    # VMEM budget: pipelined x/out row tiles + single-buffered resident params +
    # f32 intermediate activations, with headroom, under a generation-aware ceiling.
    x_bufs = 2 if x_buffers is None else int(x_buffers)
    vmem_need = (x_bufs * tile * d_in_pad * dsize
                 + x_bufs * tile * d_out_pad * out_dsize
                 + (w_bytes + b_bytes)
                 + 4 * tile * max(w.shape[1] for w in weights))
    ceiling = _vmem_ceiling_bytes()
    vmem_limit = int(min(ceiling, max(32 * 1024 * 1024, 2 * vmem_need)))
    # TODO(synk): if (w_bytes + b_bytes) alone approaches the ceiling (very large hidden
    # dims), switch to HBM-resident weights (memory_space=pl.ANY) pipelined over a K grid
    # axis with a pl.when-guarded accumulator instead of shrinking the row tile.

    def _run(specs, ospec):
        return pl.pallas_call(
            functools.partial(_fused_mlp_kernel, num_layers=num_layers),
            out_shape=jax.ShapeDtypeStruct((n_pad, d_out_pad), out_dtype),
            grid_spec=pltpu.PrefetchScalarGridSpec(
                num_scalar_prefetch=0,
                grid=(n_pad // tile,),
                in_specs=specs,
                out_specs=ospec,
            ),
            compiler_params=pltpu.CompilerParams(
                dimension_semantics=("parallel",),   # row axis shards across megacore TCs
                vmem_limit_bytes=vmem_limit),
            cost_estimate=pl.CostEstimate(
                flops=flops, transcendentals=0, bytes_accessed=bytes_accessed),
        )(prepared["alpha"], x, *flat_params)

    try:
        out_padded = _run(in_specs, out_spec)
    except Exception:
        # Fallback: plain double-buffered specs (pipeline_mode not supported by this build).
        plain_specs = [pl.BlockSpec(memory_space=pltpu.MemorySpace.SMEM),
                       pl.BlockSpec((tile, d_in_pad), lambda i: (i, 0))]
        for w, b in zip(weights, biases):
            plain_specs.append(pl.BlockSpec(w.shape, lambda i: (0, 0)))
            plain_specs.append(pl.BlockSpec(b.shape, lambda i: (0, 0)))
        out_padded = _run(plain_specs, pl.BlockSpec((tile, d_out_pad), lambda i: (i, 0)))

    local_smooth_logits = out_padded[:n, :prepared["out_dim"]]
    return local_smooth_logits, global_logits


if __name__ == "__main__":
    # Small, forward-consistent shapes.
    num_layers = 3
    feat_dim = 8
    prop_steps = 3          # -> input feature dim = (prop_steps + 1) * feat_dim = 32
    hidden_dim = 32
    output_dim = 8
    num_nodes = 16

    key = jax.random.PRNGKey(0)
    key, k_x, k_g, k_p = jax.random.split(key, 4)

    smoothed_feature = jax.random.normal(
        k_x, (num_nodes, (prop_steps + 1) * feat_dim), jnp.float32)
    global_logits = jax.random.normal(k_g, (num_nodes, output_dim), jnp.float32)

    params, prelu_alpha = init_homo_propagate_params(
        k_p, num_layers, feat_dim, hidden_dim, output_dim, prop_steps)

    # f32 compute/out for the toy-size sanity check; use compute_dtype=jnp.bfloat16
    # (all generations) and optionally out_dtype=jnp.bfloat16 for production sizes.
    prepared = prepare_params(params, prelu_alpha,
                              compute_dtype=jnp.float32, out_dtype=jnp.float32)

    # One-time X padding/cast (hoisted out of the forward path).
    x_prepared = prepare_input(prepared, smoothed_feature, tile_m=512)

    local_smooth_logits, global_out = homo_propagate_forward(
        prepared, x_prepared, global_logits)
    jax.block_until_ready(local_smooth_logits)
    jax.block_until_ready(global_out)

    # Sanity check against a pure-JAX reference of the same math (unpadded params).
    h_ref = smoothed_feature
    for i in range(num_layers - 1):
        w, b = params[i]
        y = h_ref @ w + b
        h_ref = jnp.where(y > 0, y, prelu_alpha * y)
    ref_logits = h_ref @ params[-1][0] + params[-1][1]
    assert local_smooth_logits.shape == (num_nodes, output_dim)
    assert global_out.shape == global_logits.shape
    assert jnp.allclose(local_smooth_logits, ref_logits, atol=1e-5, rtol=1e-5)

    print("KERNEL_OK")
</pallas_src>

<mosaic_0001>
module attributes {stable_mosaic.version = 11 : i64} {
  func.func @_fused_mlp_kernel(%arg0: i32, %arg1: memref<1xf32, #tpu.memory_space<smem>>, %arg2: memref<16x128xf32, #tpu.memory_space<vmem>>, %arg3: memref<128x128xf32, #tpu.memory_space<vmem>>, %arg4: memref<1x128xf32, #tpu.memory_space<vmem>>, %arg5: memref<128x128xf32, #tpu.memory_space<vmem>>, %arg6: memref<1x128xf32, #tpu.memory_space<vmem>>, %arg7: memref<128x128xf32, #tpu.memory_space<vmem>>, %arg8: memref<1x128xf32, #tpu.memory_space<vmem>>, %arg9: memref<16x128xf32, #tpu.memory_space<vmem>>) attributes {dimension_semantics = [#tpu.dimension_semantics<parallel>], iteration_bounds = array<i64: 1>, scalar_prefetch = 0 : i64, scratch_operands = 0 : i64, tpu.core_type = #tpu.core_type<tc>, window_params = [{transform_indices = @transform_0, window_bounds = array<i64: 1>}, {transform_indices = @transform_1, window_bounds = array<i64: 16, 128>}, {pipeline_mode = #tpu.pipeline_mode<synchronous>, transform_indices = @transform_2, window_bounds = array<i64: 128, 128>}, {pipeline_mode = #tpu.pipeline_mode<synchronous>, transform_indices = @transform_3, window_bounds = array<i64: 1, 128>}, {pipeline_mode = #tpu.pipeline_mode<synchronous>, transform_indices = @transform_4, window_bounds = array<i64: 128, 128>}, {pipeline_mode = #tpu.pipeline_mode<synchronous>, transform_indices = @transform_5, window_bounds = array<i64: 1, 128>}, {pipeline_mode = #tpu.pipeline_mode<synchronous>, transform_indices = @transform_6, window_bounds = array<i64: 128, 128>}, {pipeline_mode = #tpu.pipeline_mode<synchronous>, transform_indices = @transform_7, window_bounds = array<i64: 1, 128>}, {transform_indices = @transform_8, window_bounds = array<i64: 16, 128>}]} {
    %c0 = arith.constant 0 : index
    %0 = memref.load %arg1[%c0] : memref<1xf32, #tpu.memory_space<smem>>
    %c0_0 = arith.constant 0 : index
    %c0_1 = arith.constant 0 : index
    %1 = vector.load %arg2[%c0_0, %c0_1] : memref<16x128xf32, #tpu.memory_space<vmem>>, vector<16x128xf32>
    %c0_2 = arith.constant 0 : index
    %c0_3 = arith.constant 0 : index
    %2 = vector.load %arg3[%c0_2, %c0_3] : memref<128x128xf32, #tpu.memory_space<vmem>>, vector<128x128xf32>
    %cst = arith.constant dense<0.000000e+00> : vector<16x128xf32>
    %3 = tpu.matmul %1, %2, %cst {dimension_numbers = #tpu.dot_dimension_numbers<[1], [0], [0], [1], [0, 0, 1, 1], [], []>} : vector<16x128xf32>, vector<128x128xf32>, vector<16x128xf32> -> vector<16x128xf32>
    %c0_4 = arith.constant 0 : index
    %c0_5 = arith.constant 0 : index
    %4 = vector.load %arg4[%c0_4, %c0_5] : memref<1x128xf32, #tpu.memory_space<vmem>>, vector<1x128xf32>
    %5 = vector.broadcast %4 : vector<1x128xf32> to vector<16x128xf32>
    %6 = arith.addf %3, %5 : vector<16x128xf32>
    %cst_6 = arith.constant 0.000000e+00 : f32
    %7 = vector.broadcast %cst_6 : f32 to vector<16x128xf32>
    %8 = arith.cmpf ogt, %6, %7 : vector<16x128xf32>
    %9 = vector.broadcast %0 : f32 to vector<16x128xf32>
    %10 = arith.mulf %9, %6 : vector<16x128xf32>
    %11 = arith.select %8, %6, %10 : vector<16x128xi1>, vector<16x128xf32>
    %c0_7 = arith.constant 0 : index
    %c0_8 = arith.constant 0 : index
    %12 = vector.load %arg5[%c0_7, %c0_8] : memref<128x128xf32, #tpu.memory_space<vmem>>, vector<128x128xf32>
    %cst_9 = arith.constant dense<0.000000e+00> : vector<16x128xf32>
    %13 = tpu.matmul %11, %12, %cst_9 {dimension_numbers = #tpu.dot_dimension_numbers<[1], [0], [0], [1], [0, 0, 1, 1], [], []>} : vector<16x128xf32>, vector<128x128xf32>, vector<16x128xf32> -> vector<16x128xf32>
    %c0_10 = arith.constant 0 : index
    %c0_11 = arith.constant 0 : index
    %14 = vector.load %arg6[%c0_10, %c0_11] : memref<1x128xf32, #tpu.memory_space<vmem>>, vector<1x128xf32>
    %15 = vector.broadcast %14 : vector<1x128xf32> to vector<16x128xf32>
    %16 = arith.addf %13, %15 : vector<16x128xf32>
    %cst_12 = arith.constant 0.000000e+00 : f32
    %17 = vector.broadcast %cst_12 : f32 to vector<16x128xf32>
    %18 = arith.cmpf ogt, %16, %17 : vector<16x128xf32>
    %19 = vector.broadcast %0 : f32 to vector<16x128xf32>
    %20 = arith.mulf %19, %16 : vector<16x128xf32>
    %21 = arith.select %18, %16, %20 : vector<16x128xi1>, vector<16x128xf32>
    %c0_13 = arith.constant 0 : index
    %c0_14 = arith.constant 0 : index
    %22 = vector.load %arg7[%c0_13, %c0_14] : memref<128x128xf32, #tpu.memory_space<vmem>>, vector<128x128xf32>
    %cst_15 = arith.constant dense<0.000000e+00> : vector<16x128xf32>
    %23 = tpu.matmul %21, %22, %cst_15 {dimension_numbers = #tpu.dot_dimension_numbers<[1], [0], [0], [1], [0, 0, 1, 1], [], []>} : vector<16x128xf32>, vector<128x128xf32>, vector<16x128xf32> -> vector<16x128xf32>
    %c0_16 = arith.constant 0 : index
    %c0_17 = arith.constant 0 : index
    %24 = vector.load %arg8[%c0_16, %c0_17] : memref<1x128xf32, #tpu.memory_space<vmem>>, vector<1x128xf32>
    %25 = vector.broadcast %24 : vector<1x128xf32> to vector<16x128xf32>
    %26 = arith.addf %23, %25 : vector<16x128xf32>
    %c0_18 = arith.constant 0 : index
    %c0_19 = arith.constant 0 : index
    %27 = vector.load %arg9[%c0_18, %c0_19] : memref<16x128xf32, #tpu.memory_space<vmem>>, vector<16x128xf32>
    tpu.vector_store %arg9[%c0_18, %c0_19], %26 {strides = array<i32>} : memref<16x128xf32, #tpu.memory_space<vmem>>, vector<16x128xf32>,
    return
  }
  func.func @transform_0(%arg0: i32) -> i32 {
    %c0_i32 = arith.constant 0 : i32
    %c0_i32_0 = arith.constant 0 : i32
    return %c0_i32 : i32
  }
  func.func @transform_1(%arg0: i32) -> (i32, i32) {
    %c0_i32 = arith.constant 0 : i32
    %c0_i32_0 = arith.constant 0 : i32
    return %arg0, %c0_i32 : i32, i32
  }
  func.func @transform_2(%arg0: i32) -> (i32, i32) {
    %c0_i32 = arith.constant 0 : i32
    %c0_i32_0 = arith.constant 0 : i32
    %c0_i32_1 = arith.constant 0 : i32
    return %c0_i32, %c0_i32_0 : i32, i32
  }
  func.func @transform_3(%arg0: i32) -> (i32, i32) {
    %c0_i32 = arith.constant 0 : i32
    %c0_i32_0 = arith.constant 0 : i32
    %c0_i32_1 = arith.constant 0 : i32
    return %c0_i32, %c0_i32_0 : i32, i32
  }
  func.func @transform_4(%arg0: i32) -> (i32, i32) {
    %c0_i32 = arith.constant 0 : i32
    %c0_i32_0 = arith.constant 0 : i32
    %c0_i32_1 = arith.constant 0 : i32
    return %c0_i32, %c0_i32_0 : i32, i32
  }
  func.func @transform_5(%arg0: i32) -> (i32, i32) {
    %c0_i32 = arith.constant 0 : i32
    %c0_i32_0 = arith.constant 0 : i32
    %c0_i32_1 = arith.constant 0 : i32
    return %c0_i32, %c0_i32_0 : i32, i32
  }
  func.func @transform_6(%arg0: i32) -> (i32, i32) {
    %c0_i32 = arith.constant 0 : i32
    %c0_i32_0 = arith.constant 0 : i32
    %c0_i32_1 = arith.constant 0 : i32
    return %c0_i32, %c0_i32_0 : i32, i32
  }
  func.func @transform_7(%arg0: i32) -> (i32, i32) {
    %c0_i32 = arith.constant 0 : i32
    %c0_i32_0 = arith.constant 0 : i32
    %c0_i32_1 = arith.constant 0 : i32
    return %c0_i32, %c0_i32_0 : i32, i32
  }
  func.func @transform_8(%arg0: i32) -> (i32, i32) {
    %c0_i32 = arith.constant 0 : i32
    %c0_i32_0 = arith.constant 0 : i32
    return %arg0, %c0_i32 : i32, i32
  }
}

module attributes {stable_mosaic.version = 11 : i64} {
  func.func @_fused_mlp_kernel(%arg0: i32, %arg1: memref<1xf32, #tpu.memory_space<smem>>, %arg2: memref<16x128xf32, #tpu.memory_space<vmem>>, %arg3: memref<128x128xf32, #tpu.memory_space<vmem>>, %arg4: memref<1x128xf32, #tpu.memory_space<vmem>>, %arg5: memref<128x128xf32, #tpu.memory_space<vmem>>, %arg6: memref<1x128xf32, #tpu.memory_space<vmem>>, %arg7: memref<128x128xf32, #tpu.memory_space<vmem>>, %arg8: memref<1x128xf32, #tpu.memory_space<vmem>>, %arg9: memref<16x128xf32, #tpu.memory_space<vmem>>) attributes {dimension_semantics = [#tpu.dimension_semantics<parallel>], iteration_bounds = array<i64: 1>, scalar_prefetch = 0 : i64, scratch_operands = 0 : i64, tpu.core_type = #tpu.core_type<tc>, window_params = [{transform_indices = @transform_0, window_bounds = array<i64: 1>}, {transform_indices = @transform_1, window_bounds = array<i64: 16, 128>}, {pipeline_mode = #tpu.pipeline_mode<synchronous>, transform_indices = @transform_2, window_bounds = array<i64: 128, 128>}, {pipeline_mode = #tpu.pipeline_mode<synchronous>, transform_indices = @transform_3, window_bounds = array<i64: 1, 128>}, {pipeline_mode = #tpu.pipeline_mode<synchronous>, transform_indices = @transform_4, window_bounds = array<i64: 128, 128>}, {pipeline_mode = #tpu.pipeline_mode<synchronous>, transform_indices = @transform_5, window_bounds = array<i64: 1, 128>}, {pipeline_mode = #tpu.pipeline_mode<synchronous>, transform_indices = @transform_6, window_bounds = array<i64: 128, 128>}, {pipeline_mode = #tpu.pipeline_mode<synchronous>, transform_indices = @transform_7, window_bounds = array<i64: 1, 128>}, {transform_indices = @transform_8, window_bounds = array<i64: 16, 128>}]} {
    %c0 = arith.constant 0 : index
    %0 = memref.load %arg1[%c0] : memref<1xf32, #tpu.memory_space<smem>>
    %c0_0 = arith.constant 0 : index
    %c0_1 = arith.constant 0 : index
    %1 = vector.load %arg2[%c0_0, %c0_1] : memref<16x128xf32, #tpu.memory_space<vmem>>, vector<16x128xf32>
    %c0_2 = arith.constant 0 : index
    %c0_3 = arith.constant 0 : index
    %2 = vector.load %arg3[%c0_2, %c0_3] : memref<128x128xf32, #tpu.memory_space<vmem>>, vector<128x128xf32>
    %cst = arith.constant dense<0.000000e+00> : vector<16x128xf32>
    %3 = tpu.matmul %1, %2, %cst {dimension_numbers = #tpu.dot_dimension_numbers<[1], [0], [0], [1], [0, 0, 1, 1], [], []>} : vector<16x128xf32>, vector<128x128xf32>, vector<16x128xf32> -> vector<16x128xf32>
    %c0_4 = arith.constant 0 : index
    %c0_5 = arith.constant 0 : index
    %4 = vector.load %arg4[%c0_4, %c0_5] : memref<1x128xf32, #tpu.memory_space<vmem>>, vector<1x128xf32>
    %5 = vector.broadcast %4 : vector<1x128xf32> to vector<16x128xf32>
    %6 = arith.addf %3, %5 : vector<16x128xf32>
    %cst_6 = arith.constant 0.000000e+00 : f32
    %7 = vector.broadcast %cst_6 : f32 to vector<16x128xf32>
    %8 = arith.cmpf ogt, %6, %7 : vector<16x128xf32>
    %9 = vector.broadcast %0 : f32 to vector<16x128xf32>
    %10 = arith.mulf %9, %6 : vector<16x128xf32>
    %11 = arith.select %8, %6, %10 : vector<16x128xi1>, vector<16x128xf32>
    %c0_7 = arith.constant 0 : index
    %c0_8 = arith.constant 0 : index
    %12 = vector.load %arg5[%c0_7, %c0_8] : memref<128x128xf32, #tpu.memory_space<vmem>>, vector<128x128xf32>
    %cst_9 = arith.constant dense<0.000000e+00> : vector<16x128xf32>
    %13 = tpu.matmul %11, %12, %cst_9 {dimension_numbers = #tpu.dot_dimension_numbers<[1], [0], [0], [1], [0, 0, 1, 1], [], []>} : vector<16x128xf32>, vector<128x128xf32>, vector<16x128xf32> -> vector<16x128xf32>
    %c0_10 = arith.constant 0 : index
    %c0_11 = arith.constant 0 : index
    %14 = vector.load %arg6[%c0_10, %c0_11] : memref<1x128xf32, #tpu.memory_space<vmem>>, vector<1x128xf32>
    %15 = vector.broadcast %14 : vector<1x128xf32> to vector<16x128xf32>
    %16 = arith.addf %13, %15 : vector<16x128xf32>
    %cst_12 = arith.constant 0.000000e+00 : f32
    %17 = vector.broadcast %cst_12 : f32 to vector<16x128xf32>
    %18 = arith.cmpf ogt, %16, %17 : vector<16x128xf32>
    %19 = vector.broadcast %0 : f32 to vector<16x128xf32>
    %20 = arith.mulf %19, %16 : vector<16x128xf32>
    %21 = arith.select %18, %16, %20 : vector<16x128xi1>, vector<16x128xf32>
    %c0_13 = arith.constant 0 : index
    %c0_14 = arith.constant 0 : index
    %22 = vector.load %arg7[%c0_13, %c0_14] : memref<128x128xf32, #tpu.memory_space<vmem>>, vector<128x128xf32>
    %cst_15 = arith.constant dense<0.000000e+00> : vector<16x128xf32>
    %23 = tpu.matmul %21, %22, %cst_15 {dimension_numbers = #tpu.dot_dimension_numbers<[1], [0], [0], [1], [0, 0, 1, 1], [], []>} : vector<16x128xf32>, vector<128x128xf32>, vector<16x128xf32> -> vector<16x128xf32>
    %c0_16 = arith.constant 0 : index
    %c0_17 = arith.constant 0 : index
    %24 = vector.load %arg8[%c0_16, %c0_17] : memref<1x128xf32, #tpu.memory_space<vmem>>, vector<1x128xf32>
    %25 = vector.broadcast %24 : vector<1x128xf32> to vector<16x128xf32>
    %26 = arith.addf %23, %25 : vector<16x128xf32>
    %c0_18 = arith.constant 0 : index
    %c0_19 = arith.constant 0 : index
    %27 = vector.load %arg9[%c0_18, %c0_19] : memref<16x128xf32, #tpu.memory_space<vmem>>, vector<16x128xf32>
    tpu.vector_store %arg9[%c0_18, %c0_19], %26 {strides = array<i32>} : memref<16x128xf32, #tpu.memory_space<vmem>>, vector<16x128xf32>,
    return
  }
  func.func @transform_0(%arg0: i32) -> i32 {
    %c0_i32 = arith.constant 0 : i32
    %c0_i32_0 = arith.constant 0 : i32
    return %c0_i32 : i32
  }
  func.func @transform_1(%arg0: i32) -> (i32, i32) {
    %c0_i32 = arith.constant 0 : i32
    %c0_i32_0 = arith.constant 0 : i32
    return %arg0, %c0_i32 : i32, i32
  }
  func.func @transform_2(%arg0: i32) -> (i32, i32) {
    %c0_i32 = arith.constant 0 : i32
    %c0_i32_0 = arith.constant 0 : i32
    %c0_i32_1 = arith.constant 0 : i32
    return %c0_i32, %c0_i32_0 : i32, i32
  }
  func.func @transform_3(%arg0: i32) -> (i32, i32) {
    %c0_i32 = arith.constant 0 : i32
    %c0_i32_0 = arith.constant 0 : i32
    %c0_i32_1 = arith.constant 0 : i32
    return %c0_i32, %c0_i32_0 : i32, i32
  }
  func.func @transform_4(%arg0: i32) -> (i32, i32) {
    %c0_i32 = arith.constant 0 : i32
    %c0_i32_0 = arith.constant 0 : i32
    %c0_i32_1 = arith.constant 0 : i32
    return %c0_i32, %c0_i32_0 : i32, i32
  }
  func.func @transform_5(%arg0: i32) -> (i32, i32) {
    %c0_i32 = arith.constant 0 : i32
    %c0_i32_0 = arith.constant 0 : i32
    %c0_i32_1 = arith.constant 0 : i32
    return %c0_i32, %c0_i32_0 : i32, i32
  }
  func.func @transform_6(%arg0: i32) -> (i32, i32) {
    %c0_i32 = arith.constant 0 : i32
    %c0_i32_0 = arith.constant 0 : i32
    %c0_i32_1 = arith.constant 0 : i32
    return %c0_i32, %c0_i32_0 : i32, i32
  }
  func.func @transform_7(%arg0: i32) -> (i32, i32) {
    %c0_i32 = arith.constant 0 : i32
    %c0_i32_0 = arith.constant 0 : i32
    %c0_i32_1 = arith.constant 0 : i32
    return %c0_i32, %c0_i32_0 : i32, i32
  }
  func.func @transform_8(%arg0: i32) -> (i32, i32) {
    %c0_i32 = arith.constant 0 : i32
    %c0_i32_0 = arith.constant 0 : i32
    return %arg0, %c0_i32 : i32, i32
  }
}

</mosaic_0001>

<llo_original>
// kernel: tpu_custom_call.1
$region0: #{tpu_custom_call.1}
  #allocation0 [shape = 'u32[]', space=smem, size = 0x4, offset = 0x4, fixed_abs, tag = 'smem constant byte address 0x4 - core index']
  #allocation1 [shape = 'u32[72,128]{1,0:T(1,128)}', space=vmem, size = 0x9000, scoped, tag = 'internal scratch']
  #allocation2 [shape = 'f32[1]{0:T(128)S(6)}', space=smem, size = 0x200, scoped, tag = 'scoped memory for tpu_custom_call.1']
  %s0 = inlined_call_operand.<no memory space> [shape: f32[1], index: 0, kind: input, shape index: {}]
  %s1 = inlined_call_operand.hbm [shape: f32[16,128], index: 1, kind: input, shape index: {}]
  %s2 = inlined_call_operand.hbm [shape: f32[128,128], index: 2, kind: input, shape index: {}]
  %s3 = inlined_call_operand.vmem [shape: f32[1,128], index: 3, kind: input, shape index: {}]
  %s4 = inlined_call_operand.hbm [shape: f32[128,128], index: 4, kind: input, shape index: {}]
  %s5 = inlined_call_operand.vmem [shape: f32[1,128], index: 5, kind: input, shape index: {}]
  %s6 = inlined_call_operand.hbm [shape: f32[128,128], index: 6, kind: input, shape index: {}]
  %s7 = inlined_call_operand.vmem [shape: f32[1,128], index: 7, kind: input, shape index: {}]
  %s8 = inlined_call_operand.hbm [shape: f32[16,128], index: 8, kind: output, shape index: {}]
  %s9 = sld [smem:[#allocation0]]
  $region58: #{tpu_custom_call.1} parent=0
    _
  %s11 = ssub.s32 1, %s9
  %s12 = scalar_select 0, %s11, %s9
  %13 = sst [smem:[#allocation2]] %s0
  $region1: #{tpu_custom_call.1} parent=0
    #allocation3 [shape = 'u8[8192]{0}', space=vmem, size = 0x2000, scoped, tag = 'input window, operand 1, single buffered']
    #allocation4 [shape = 's32[1]{0}', space=sflag, size = 0x4, scoped, tag = 'scoped memory for tpu_custom_call.1']
    #allocation5 [shape = 's32[1]{0}', space=sflag, size = 0x4, scoped, tag = 'scoped memory for tpu_custom_call.1']
    #allocation6 [shape = 'u8[65536]{0}', space=vmem, size = 0x10000, scoped, tag = 'input window, operand 2, single buffered']
    #allocation7 [shape = 's32[1]{0}', space=sflag, size = 0x4, scoped, tag = 'scoped memory for tpu_custom_call.1']
    #allocation8 [shape = 'u8[65536]{0}', space=vmem, size = 0x10000, scoped, tag = 'input window, operand 4, single buffered']
    #allocation9 [shape = 'u8[65536]{0}', space=vmem, size = 0x10000, scoped, tag = 'input window, operand 6, single buffered']
    #allocation10 [shape = 's32[1]{0}', space=sflag, size = 0x4, scoped, tag = 'scoped memory for tpu_custom_call.1']
    #allocation11 [shape = 'u8[8192]{0}', space=vmem, size = 0x2000, scoped, tag = 'output window, operand 0, single buffered']
    %14 = vsyncpa [#allocation4], 0
    %15 = vsyncpa [#allocation7], 0
    %16 = vsyncpa [#allocation10], 0
    %17 = vsyncpa [#allocation5], 0
    // Predicated region
    $region2: #{tpu_custom_call.1} parent=1 // pred_check
      _
    $region3: #{tpu_custom_call.1} parent=1 // pred_check_branch
      %19 = sbr.rel (0) target = $region5
    $region4: #{tpu_custom_call.1} parent=1 // pred_region
      _
    $region5: #{tpu_custom_call.1} parent=1 // pred_fallthru
      _
    // Predicated region
    $region6: #{tpu_custom_call.1} parent=1 // pred_check
      _
    $region7: #{tpu_custom_call.1} parent=1 // pred_check_branch
      %21 = sbr.rel (0) target = $region9
    $region8: #{tpu_custom_call.1} parent=1 // pred_region
      %23 = vsyncadd [#allocation4], 0
      %s24 = sshll.u32 %s1, 4
      %s25 = int_to_ptr.hbm [resolvable:$true] %s24
      %s26 = sshll.u32 [#allocation3], 4
      %s27 = int_to_ptr.vmem [resolvable:$true] %s26
      %32 = dma.hbm_to_vmem [thread:$0]  %s25, 256, %s27, [#allocation4], 128, 128, 8
    $region9: #{tpu_custom_call.1} parent=1 // pred_fallthru
      _
    // Predicated region
    $region10: #{tpu_custom_call.1} parent=1 // pred_check
      _
    $region11: #{tpu_custom_call.1} parent=1 // pred_check_branch
      %34 = sbr.rel (0) target = $region13
    $region12: #{tpu_custom_call.1} parent=1 // pred_region
      %36 = vsyncadd [#allocation7], 0
      %s37 = sshll.u32 %s2, 4
      %s38 = int_to_ptr.hbm [resolvable:$true] %s37
      %s39 = sshll.u32 [#allocation6], 4
      %s40 = int_to_ptr.vmem [resolvable:$true] %s39
      %45 = dma.hbm_to_vmem [thread:$0]  %s38, 2048, %s40, [#allocation7], 128, 128, 8
    $region13: #{tpu_custom_call.1} parent=1 // pred_fallthru
      _
    // Predicated region
    $region14: #{tpu_custom_call.1} parent=1 // pred_check
      _
    $region15: #{tpu_custom_call.1} parent=1 // pred_check_branch
      %47 = sbr.rel (0) target = $region17
    $region16: #{tpu_custom_call.1} parent=1 // pred_region
      _
    $region17: #{tpu_custom_call.1} parent=1 // pred_fallthru
      _
    // Predicated region
    $region18: #{tpu_custom_call.1} parent=1 // pred_check
      _
    $region19: #{tpu_custom_call.1} parent=1 // pred_check_branch
      %49 = sbr.rel (0) target = $region21
    $region20: #{tpu_custom_call.1} parent=1 // pred_region
      %51 = vsyncadd [#allocation7], 0
      %s52 = sshll.u32 %s4, 4
      %s53 = int_to_ptr.hbm [resolvable:$true] %s52
      %s54 = sshll.u32 [#allocation8], 4
      %s55 = int_to_ptr.vmem [resolvable:$true] %s54
      %60 = dma.hbm_to_vmem [thread:$0]  %s53, 2048, %s55, [#allocation7], 128, 128, 8
    $region21: #{tpu_custom_call.1} parent=1 // pred_fallthru
      _
    // Predicated region
    $region22: #{tpu_custom_call.1} parent=1 // pred_check
      _
    $region23: #{tpu_custom_call.1} parent=1 // pred_check_branch
      %62 = sbr.rel (0) target = $region25
    $region24: #{tpu_custom_call.1} parent=1 // pred_region
      _
    $region25: #{tpu_custom_call.1} parent=1 // pred_fallthru
      _
    // Predicated region
    $region26: #{tpu_custom_call.1} parent=1 // pred_check
      _
    $region27: #{tpu_custom_call.1} parent=1 // pred_check_branch
      %64 = sbr.rel (0) target = $region29
    $region28: #{tpu_custom_call.1} parent=1 // pred_region
      %66 = vsyncadd [#allocation10], 0
      %s67 = sshll.u32 %s6, 4
      %s68 = int_to_ptr.hbm [resolvable:$true] %s67
      %s69 = sshll.u32 [#allocation9], 4
      %s70 = int_to_ptr.vmem [resolvable:$true] %s69
      %75 = dma.hbm_to_vmem [thread:$0]  %s68, 2048, %s70, [#allocation10], 128, 128, 8
    $region29: #{tpu_custom_call.1} parent=1 // pred_fallthru
      _
    // Predicated region
    $region30: #{tpu_custom_call.1} parent=1 // pred_check
      _
    $region31: #{tpu_custom_call.1} parent=1 // pred_check_branch
      %77 = sbr.rel (0) target = $region33
    $region32: #{tpu_custom_call.1} parent=1 // pred_region
      _
    $region33: #{tpu_custom_call.1} parent=1 // pred_fallthru
      _
    // Predicated region
    $region34: #{tpu_custom_call.1} parent=1 // pred_check
      _
    $region35: #{tpu_custom_call.1} parent=1 // pred_check_branch
      %79 = sbr.rel (0) target = $region37
    $region36: #{tpu_custom_call.1} parent=1 // pred_region
      %81 = dma.done [#allocation4], 256
    $region37: #{tpu_custom_call.1} parent=1 // pred_fallthru
      _
    // Predicated region
    $region38: #{tpu_custom_call.1} parent=1 // pred_check
      _
    $region39: #{tpu_custom_call.1} parent=1 // pred_check_branch
      %83 = sbr.rel (0) target = $region41
    $region40: #{tpu_custom_call.1} parent=1 // pred_region
      %85 = dma.done [#allocation7], 2048
    $region41: #{tpu_custom_call.1} parent=1 // pred_fallthru
      _
    // Predicated region
    $region42: #{tpu_custom_call.1} parent=1 // pred_check
      _
    $region43: #{tpu_custom_call.1} parent=1 // pred_check_branch
      %87 = sbr.rel (0) target = $region45
    $region44: #{tpu_custom_call.1} parent=1 // pred_region
      %89 = dma.done [#allocation7], 2048
    $region45: #{tpu_custom_call.1} parent=1 // pred_fallthru
      _
    // Predicated region
    $region46: #{tpu_custom_call.1} parent=1 // pred_check
      _
    $region47: #{tpu_custom_call.1} parent=1 // pred_check_branch
      %91 = sbr.rel (0) target = $region49
    $region48: #{tpu_custom_call.1} parent=1 // pred_region
      %93 = dma.done [#allocation10], 2048
    $region49: #{tpu_custom_call.1} parent=1 // pred_fallthru
      _
    %s94 = sld [smem:[#allocation2]]
    %v95 = vld [vmem:[#allocation3] sm:$0xff]
    %v96 = vld [vmem:[#allocation3 + $0x8] sm:$0xff]
    %v97 = vld [vmem:[#allocation6] sm:$0xff]
    %v98 = vld [vmem:[#allocation6 + $0x8] sm:$0xff]
    %v99 = vld [vmem:[#allocation6 + $0x10] sm:$0xff]
    %v100 = vld [vmem:[#allocation6 + $0x18] sm:$0xff]
    %v101 = vld [vmem:[#allocation6 + $0x20] sm:$0xff]
    %v102 = vld [vmem:[#allocation6 + $0x28] sm:$0xff]
    %v103 = vld [vmem:[#allocation6 + $0x30] sm:$0xff]
    %v104 = vld [vmem:[#allocation6 + $0x38] sm:$0xff]
    %v105 = vld [vmem:[#allocation6 + $0x40] sm:$0xff]
    %v106 = vld [vmem:[#allocation6 + $0x48] sm:$0xff]
    %v107 = vld [vmem:[#allocation6 + $0x50] sm:$0xff]
    %v108 = vld [vmem:[#allocation6 + $0x58] sm:$0xff]
    %v109 = vld [vmem:[#allocation6 + $0x60] sm:$0xff]
    %v110 = vld [vmem:[#allocation6 + $0x68] sm:$0xff]
    %v111 = vld [vmem:[#allocation6 + $0x70] sm:$0xff]
    %v112 = vld [vmem:[#allocation6 + $0x78] sm:$0xff]
    %v113 = vld [vmem:[%s3] sm:$0x1]
    %v115 = vperm.slane %v113, 0
    %117 = vmatpush.msra.mxu0 %v112
    %118 = vmatpush.msra.mxu0 %v111
    %119 = vmatpush.msra.mxu0 %v110
    %120 = vmatpush.msra.mxu0 %v109
    %121 = vmatpush.msra.mxu0 %v108
    %122 = vmatpush.msra.mxu0 %v107
    %123 = vmatpush.msra.mxu0 %v106
    %124 = vmatpush.msra.mxu0 %v105
    %125 = vmatpush.msra.mxu0 %v104
    %126 = vmatpush.msra.mxu0 %v103
    %127 = vmatpush.msra.mxu0 %v102
    %128 = vmatpush.msra.mxu0 %v101
    %129 = vmatpush.msra.mxu0 %v100
    %130 = vmatpush.msra.mxu0 %v99
    %131 = vmatpush.msra.mxu0 %v98
    %132 = vmatpush.msra.mxu0 %v97
    %133 = vmatmul.f32.gmra.mxu0 %v95
    %v134 = vpop.f32.mrf.mxu0
    %v135 = vadd.f32 %v115, %v134
    %136 = vmatmul.f32.gmra.mxu0 %v96
    %v137 = vpop.f32.mrf.mxu0
    %v138 = vadd.f32 %v115, %v137
    %139 = vdwg.mxu0
    %vm140 = vcmp.gt.f32.partialorder %v135, 0.0
    %vm141 = vcmp.gt.f32.partialorder %v138, 0.0
    %v142 = vstv %s94
    %v143 = vmul.f32 %v142, %v135
    %v144 = vmul.f32 %v142, %v138
    %v145 = vsel %vm140, %v135, %v143
    %v146 = vsel %vm141, %v138, %v144
    %v147 = vld [vmem:[#allocation8] sm:$0xff]
    %v148 = vld [vmem:[#allocation8 + $0x8] sm:$0xff]
    %v149 = vld [vmem:[#allocation8 + $0x10] sm:$0xff]
    %v150 = vld [vmem:[#allocation8 + $0x18] sm:$0xff]
    %v151 = vld [vmem:[#allocation8 + $0x20] sm:$0xff]
    %v152 = vld [vmem:[#allocation8 + $0x28] sm:$0xff]
    %v153 = vld [vmem:[#allocation8 + $0x30] sm:$0xff]
    %v154 = vld [vmem:[#allocation8 + $0x38] sm:$0xff]
    %v155 = vld [vmem:[#allocation8 + $0x40] sm:$0xff]
    %v156 = vld [vmem:[#allocation8 + $0x48] sm:$0xff]
    %v157 = vld [vmem:[#allocation8 + $0x50] sm:$0xff]
    %v158 = vld [vmem:[#allocation8 + $0x58] sm:$0xff]
    %v159 = vld [vmem:[#allocation8 + $0x60] sm:$0xff]
    %v160 = vld [vmem:[#allocation8 + $0x68] sm:$0xff]
    %v161 = vld [vmem:[#allocation8 + $0x70] sm:$0xff]
    %v162 = vld [vmem:[#allocation8 + $0x78] sm:$0xff]
    %v163 = vld [vmem:[%s5] sm:$0x1]
    %v165 = vperm.slane %v163, 0
    %167 = vmatpush.msra.mxu0 %v162
    %168 = vmatpush.msra.mxu0 %v161
    %169 = vmatpush.msra.mxu0 %v160
    %170 = vmatpush.msra.mxu0 %v159
    %171 = vmatpush.msra.mxu0 %v158
    %172 = vmatpush.msra.mxu0 %v157
    %173 = vmatpush.msra.mxu0 %v156
    %174 = vmatpush.msra.mxu0 %v155
    %175 = vmatpush.msra.mxu0 %v154
    %176 = vmatpush.msra.mxu0 %v153
    %177 = vmatpush.msra.mxu0 %v152
    %178 = vmatpush.msra.mxu0 %v151
    %179 = vmatpush.msra.mxu0 %v150
    %180 = vmatpush.msra.mxu0 %v149
    %181 = vmatpush.msra.mxu0 %v148
    %182 = vmatpush.msra.mxu0 %v147
    %183 = vmatmul.f32.gmra.mxu0 %v145
    %v184 = vpop.f32.mrf.mxu0
    %v185 = vadd.f32 %v165, %v184
    %186 = vmatmul.f32.gmra.mxu0 %v146
    %v187 = vpop.f32.mrf.mxu0
    %v188 = vadd.f32 %v165, %v187
    %189 = vdwg.mxu0
    %vm190 = vcmp.gt.f32.partialorder %v185, 0.0
    %vm191 = vcmp.gt.f32.partialorder %v188, 0.0
    %v192 = vmul.f32 %v142, %v185
    %v193 = vmul.f32 %v142, %v188
    %v194 = vsel %vm190, %v185, %v192
    %v195 = vsel %vm191, %v188, %v193
    %v196 = vld [vmem:[#allocation9] sm:$0xff]
    %v197 = vld [vmem:[#allocation9 + $0x8] sm:$0xff]
    %v198 = vld [vmem:[#allocation9 + $0x10] sm:$0xff]
    %v199 = vld [vmem:[#allocation9 + $0x18] sm:$0xff]
    %v200 = vld [vmem:[#allocation9 + $0x20] sm:$0xff]
    %v201 = vld [vmem:[#allocation9 + $0x28] sm:$0xff]
    %v202 = vld [vmem:[#allocation9 + $0x30] sm:$0xff]
    %v203 = vld [vmem:[#allocation9 + $0x38] sm:$0xff]
    %v204 = vld [vmem:[#allocation9 + $0x40] sm:$0xff]
    %v205 = vld [vmem:[#allocation9 + $0x48] sm:$0xff]
    %v206 = vld [vmem:[#allocation9 + $0x50] sm:$0xff]
    %v207 = vld [vmem:[#allocation9 + $0x58] sm:$0xff]
    %v208 = vld [vmem:[#allocation9 + $0x60] sm:$0xff]
    %v209 = vld [vmem:[#allocation9 + $0x68] sm:$0xff]
    %v210 = vld [vmem:[#allocation9 + $0x70] sm:$0xff]
    %v211 = vld [vmem:[#allocation9 + $0x78] sm:$0xff]
    %v212 = vld [vmem:[%s7] sm:$0x1]
    %v214 = vperm.slane %v212, 0
    %216 = vmatpush.msra.mxu0 %v211
    %217 = vmatpush.msra.mxu0 %v210
    %218 = vmatpush.msra.mxu0 %v209
    %219 = vmatpush.msra.mxu0 %v208
    %220 = vmatpush.msra.mxu0 %v207
    %221 = vmatpush.msra.mxu0 %v206
    %222 = vmatpush.msra.mxu0 %v205
    %223 = vmatpush.msra.mxu0 %v204
    %224 = vmatpush.msra.mxu0 %v203
    %225 = vmatpush.msra.mxu0 %v202
    %226 = vmatpush.msra.mxu0 %v201
    %227 = vmatpush.msra.mxu0 %v200
    %228 = vmatpush.msra.mxu0 %v199
    %229 = vmatpush.msra.mxu0 %v198
    %230 = vmatpush.msra.mxu0 %v197
    %231 = vmatpush.msra.mxu0 %v196
    %232 = vmatmul.f32.gmra.mxu0 %v194
    %v233 = vpop.f32.mrf.mxu0
    %v234 = vadd.f32 %v214, %v233
    %235 = vmatmul.f32.gmra.mxu0 %v195
    %v236 = vpop.f32.mrf.mxu0
    %v237 = vadd.f32 %v214, %v236
    %238 = vdwg.mxu0
    %239 = vst [vmem:[#allocation11] sm:$0xff] %v234
    %240 = vst [vmem:[#allocation11 + $0x8] sm:$0xff] %v237
    // Predicated region
    $region50: #{tpu_custom_call.1} parent=1 // pred_check
      _
    $region51: #{tpu_custom_call.1} parent=1 // pred_check_branch
      %242 = sbr.rel (0) target = $region53
    $region52: #{tpu_custom_call.1} parent=1 // pred_region
      %244 = vsyncadd [#allocation5], 0
      %s245 = sshll.u32 [#allocation11], 4
      %s246 = int_to_ptr.vmem [resolvable:$true] %s245
      %s247 = sshll.u32 %s8, 4
      %s248 = int_to_ptr.hbm [resolvable:$true] %s247
      %253 = dma.vmem_to_hbm [thread:$0]  %s246, 256, %s248, [#allocation5], 128, 128, 8
    $region53: #{tpu_custom_call.1} parent=1 // pred_fallthru
      _
    // Predicated region
    $region54: #{tpu_custom_call.1} parent=1 // pred_check
      _
    $region55: #{tpu_custom_call.1} parent=1 // pred_check_branch
      %255 = sbr.rel (0) target = $region57
    $region56: #{tpu_custom_call.1} parent=1 // pred_region
      %257 = dma.done [#allocation5], 256
    $region57: #{tpu_custom_call.1} parent=1 // pred_fallthru
      _
    %258 = vsyncpa [#allocation4], 1
    %259 = vsyncpa [#allocation7], 1
    %260 = vsyncpa [#allocation10], 1
    %261 = vsyncpa [#allocation5], 1

// kernel: tpu_custom_call.1
$region0: #{tpu_custom_call.1}
  #allocation0 [shape = 'u32[]', space=smem, size = 0x4, offset = 0x4, fixed_abs, tag = 'smem constant byte address 0x4 - core index']
  #allocation1 [shape = 'u32[72,128]{1,0:T(1,128)}', space=vmem, size = 0x9000, scoped, tag = 'internal scratch']
  #allocation2 [shape = 'f32[1]{0:T(128)S(6)}', space=smem, size = 0x200, scoped, tag = 'scoped memory for tpu_custom_call.1']
  %s0 = inlined_call_operand.<no memory space> [shape: f32[1], index: 0, kind: input, shape index: {}]
  %s1 = inlined_call_operand.hbm [shape: f32[16,128], index: 1, kind: input, shape index: {}]
  %s2 = inlined_call_operand.hbm [shape: f32[128,128], index: 2, kind: input, shape index: {}]
  %s3 = inlined_call_operand.vmem [shape: f32[1,128], index: 3, kind: input, shape index: {}]
  %s4 = inlined_call_operand.hbm [shape: f32[128,128], index: 4, kind: input, shape index: {}]
  %s5 = inlined_call_operand.vmem [shape: f32[1,128], index: 5, kind: input, shape index: {}]
  %s6 = inlined_call_operand.hbm [shape: f32[128,128], index: 6, kind: input, shape index: {}]
  %s7 = inlined_call_operand.vmem [shape: f32[1,128], index: 7, kind: input, shape index: {}]
  %s8 = inlined_call_operand.hbm [shape: f32[16,128], index: 8, kind: output, shape index: {}]
  %s9 = sld [smem:[#allocation0]]
  $region58: #{tpu_custom_call.1} parent=0
    _
  %s11 = ssub.s32 1, %s9
  %s12 = scalar_select 0, %s11, %s9
  %13 = sst [smem:[#allocation2]] %s0
  $region1: #{tpu_custom_call.1} parent=0
    #allocation3 [shape = 'u8[8192]{0}', space=vmem, size = 0x2000, scoped, tag = 'input window, operand 1, single buffered']
    #allocation4 [shape = 's32[1]{0}', space=sflag, size = 0x4, scoped, tag = 'scoped memory for tpu_custom_call.1']
    #allocation5 [shape = 's32[1]{0}', space=sflag, size = 0x4, scoped, tag = 'scoped memory for tpu_custom_call.1']
    #allocation6 [shape = 'u8[65536]{0}', space=vmem, size = 0x10000, scoped, tag = 'input window, operand 2, single buffered']
    #allocation7 [shape = 's32[1]{0}', space=sflag, size = 0x4, scoped, tag = 'scoped memory for tpu_custom_call.1']
    #allocation8 [shape = 'u8[65536]{0}', space=vmem, size = 0x10000, scoped, tag = 'input window, operand 4, single buffered']
    #allocation9 [shape = 'u8[65536]{0}', space=vmem, size = 0x10000, scoped, tag = 'input window, operand 6, single buffered']
    #allocation10 [shape = 's32[1]{0}', space=sflag, size = 0x4, scoped, tag = 'scoped memory for tpu_custom_call.1']
    #allocation11 [shape = 'u8[8192]{0}', space=vmem, size = 0x2000, scoped, tag = 'output window, operand 0, single buffered']
    %14 = vsyncpa [#allocation4], 0
    %15 = vsyncpa [#allocation7], 0
    %16 = vsyncpa [#allocation10], 0
    %17 = vsyncpa [#allocation5], 0
    // Predicated region
    $region2: #{tpu_custom_call.1} parent=1 // pred_check
      _
    $region3: #{tpu_custom_call.1} parent=1 // pred_check_branch
      %19 = sbr.rel (0) target = $region5
    $region4: #{tpu_custom_call.1} parent=1 // pred_region
      _
    $region5: #{tpu_custom_call.1} parent=1 // pred_fallthru
      _
    // Predicated region
    $region6: #{tpu_custom_call.1} parent=1 // pred_check
      _
    $region7: #{tpu_custom_call.1} parent=1 // pred_check_branch
      %21 = sbr.rel (0) target = $region9
    $region8: #{tpu_custom_call.1} parent=1 // pred_region
      %23 = vsyncadd [#allocation4], 0
      %s24 = sshll.u32 %s1, 4
      %s25 = int_to_ptr.hbm [resolvable:$true] %s24
      %s26 = sshll.u32 [#allocation3], 4
      %s27 = int_to_ptr.vmem [resolvable:$true] %s26
      %32 = dma.hbm_to_vmem [thread:$0]  %s25, 256, %s27, [#allocation4], 128, 128, 8
    $region9: #{tpu_custom_call.1} parent=1 // pred_fallthru
      _
    // Predicated region
    $region10: #{tpu_custom_call.1} parent=1 // pred_check
      _
    $region11: #{tpu_custom_call.1} parent=1 // pred_check_branch
      %34 = sbr.rel (0) target = $region13
    $region12: #{tpu_custom_call.1} parent=1 // pred_region
      %36 = vsyncadd [#allocation7], 0
      %s37 = sshll.u32 %s2, 4
      %s38 = int_to_ptr.hbm [resolvable:$true] %s37
      %s39 = sshll.u32 [#allocation6], 4
      %s40 = int_to_ptr.vmem [resolvable:$true] %s39
      %45 = dma.hbm_to_vmem [thread:$0]  %s38, 2048, %s40, [#allocation7], 128, 128, 8
    $region13: #{tpu_custom_call.1} parent=1 // pred_fallthru
      _
    // Predicated region
    $region14: #{tpu_custom_call.1} parent=1 // pred_check
      _
    $region15: #{tpu_custom_call.1} parent=1 // pred_check_branch
      %47 = sbr.rel (0) target = $region17
    $region16: #{tpu_custom_call.1} parent=1 // pred_region
      _
    $region17: #{tpu_custom_call.1} parent=1 // pred_fallthru
      _
    // Predicated region
    $region18: #{tpu_custom_call.1} parent=1 // pred_check
      _
    $region19: #{tpu_custom_call.1} parent=1 // pred_check_branch
      %49 = sbr.rel (0) target = $region21
    $region20: #{tpu_custom_call.1} parent=1 // pred_region
      %51 = vsyncadd [#allocation7], 0
      %s52 = sshll.u32 %s4, 4
      %s53 = int_to_ptr.hbm [resolvable:$true] %s52
      %s54 = sshll.u32 [#allocation8], 4
      %s55 = int_to_ptr.vmem [resolvable:$true] %s54
      %60 = dma.hbm_to_vmem [thread:$0]  %s53, 2048, %s55, [#allocation7], 128, 128, 8
    $region21: #{tpu_custom_call.1} parent=1 // pred_fallthru
      _
    // Predicated region
    $region22: #{tpu_custom_call.1} parent=1 // pred_check
      _
    $region23: #{tpu_custom_call.1} parent=1 // pred_check_branch
      %62 = sbr.rel (0) target = $region25
    $region24: #{tpu_custom_call.1} parent=1 // pred_region
      _
    $region25: #{tpu_custom_call.1} parent=1 // pred_fallthru
      _
    // Predicated region
    $region26: #{tpu_custom_call.1} parent=1 // pred_check
      _
    $region27: #{tpu_custom_call.1} parent=1 // pred_check_branch
      %64 = sbr.rel (0) target = $region29
    $region28: #{tpu_custom_call.1} parent=1 // pred_region
      %66 = vsyncadd [#allocation10], 0
      %s67 = sshll.u32 %s6, 4
      %s68 = int_to_ptr.hbm [resolvable:$true] %s67
      %s69 = sshll.u32 [#allocation9], 4
      %s70 = int_to_ptr.vmem [resolvable:$true] %s69
      %75 = dma.hbm_to_vmem [thread:$0]  %s68, 2048, %s70, [#allocation10], 128, 128, 8
    $region29: #{tpu_custom_call.1} parent=1 // pred_fallthru
      _
    // Predicated region
    $region30: #{tpu_custom_call.1} parent=1 // pred_check
      _
    $region31: #{tpu_custom_call.1} parent=1 // pred_check_branch
      %77 = sbr.rel (0) target = $region33
    $region32: #{tpu_custom_call.1} parent=1 // pred_region
      _
    $region33: #{tpu_custom_call.1} parent=1 // pred_fallthru
      _
    // Predicated region
    $region34: #{tpu_custom_call.1} parent=1 // pred_check
      _
    $region35: #{tpu_custom_call.1} parent=1 // pred_check_branch
      %79 = sbr.rel (0) target = $region37
    $region36: #{tpu_custom_call.1} parent=1 // pred_region
      %81 = dma.done [#allocation4], 256
    $region37: #{tpu_custom_call.1} parent=1 // pred_fallthru
      _
    // Predicated region
    $region38: #{tpu_custom_call.1} parent=1 // pred_check
      _
    $region39: #{tpu_custom_call.1} parent=1 // pred_check_branch
      %83 = sbr.rel (0) target = $region41
    $region40: #{tpu_custom_call.1} parent=1 // pred_region
      %85 = dma.done [#allocation7], 2048
    $region41: #{tpu_custom_call.1} parent=1 // pred_fallthru
      _
    // Predicated region
    $region42: #{tpu_custom_call.1} parent=1 // pred_check
      _
    $region43: #{tpu_custom_call.1} parent=1 // pred_check_branch
      %87 = sbr.rel (0) target = $region45
    $region44: #{tpu_custom_call.1} parent=1 // pred_region
      %89 = dma.done [#allocation7], 2048
    $region45: #{tpu_custom_call.1} parent=1 // pred_fallthru
      _
    // Predicated region
    $region46: #{tpu_custom_call.1} parent=1 // pred_check
      _
    $region47: #{tpu_custom_call.1} parent=1 // pred_check_branch
      %91 = sbr.rel (0) target = $region49
    $region48: #{tpu_custom_call.1} parent=1 // pred_region
      %93 = dma.done [#allocation10], 2048
    $region49: #{tpu_custom_call.1} parent=1 // pred_fallthru
      _
    %s94 = sld [smem:[#allocation2]]
    %v95 = vld [vmem:[#allocation3] sm:$0xff]
    %v96 = vld [vmem:[#allocation3 + $0x8] sm:$0xff]
    %v97 = vld [vmem:[#allocation6] sm:$0xff]
    %v98 = vld [vmem:[#allocation6 + $0x8] sm:$0xff]
    %v99 = vld [vmem:[#allocation6 + $0x10] sm:$0xff]
    %v100 = vld [vmem:[#allocation6 + $0x18] sm:$0xff]
    %v101 = vld [vmem:[#allocation6 + $0x20] sm:$0xff]
    %v102 = vld [vmem:[#allocation6 + $0x28] sm:$0xff]
    %v103 = vld [vmem:[#allocation6 + $0x30] sm:$0xff]
    %v104 = vld [vmem:[#allocation6 + $0x38] sm:$0xff]
    %v105 = vld [vmem:[#allocation6 + $0x40] sm:$0xff]
    %v106 = vld [vmem:[#allocation6 + $0x48] sm:$0xff]
    %v107 = vld [vmem:[#allocation6 + $0x50] sm:$0xff]
    %v108 = vld [vmem:[#allocation6 + $0x58] sm:$0xff]
    %v109 = vld [vmem:[#allocation6 + $0x60] sm:$0xff]
    %v110 = vld [vmem:[#allocation6 + $0x68] sm:$0xff]
    %v111 = vld [vmem:[#allocation6 + $0x70] sm:$0xff]
    %v112 = vld [vmem:[#allocation6 + $0x78] sm:$0xff]
    %v113 = vld [vmem:[%s3] sm:$0x1]
    %v115 = vperm.slane %v113, 0
    %117 = vmatpush.msra.mxu0 %v112
    %118 = vmatpush.msra.mxu0 %v111
    %119 = vmatpush.msra.mxu0 %v110
    %120 = vmatpush.msra.mxu0 %v109
    %121 = vmatpush.msra.mxu0 %v108
    %122 = vmatpush.msra.mxu0 %v107
    %123 = vmatpush.msra.mxu0 %v106
    %124 = vmatpush.msra.mxu0 %v105
    %125 = vmatpush.msra.mxu0 %v104
    %126 = vmatpush.msra.mxu0 %v103
    %127 = vmatpush.msra.mxu0 %v102
    %128 = vmatpush.msra.mxu0 %v101
    %129 = vmatpush.msra.mxu0 %v100
    %130 = vmatpush.msra.mxu0 %v99
    %131 = vmatpush.msra.mxu0 %v98
    %132 = vmatpush.msra.mxu0 %v97
    %133 = vmatmul.f32.gmra.mxu0 %v95
    %v134 = vpop.f32.mrf.mxu0
    %v135 = vadd.f32 %v115, %v134
    %136 = vmatmul.f32.gmra.mxu0 %v96
    %v137 = vpop.f32.mrf.mxu0
    %v138 = vadd.f32 %v115, %v137
    %139 = vdwg.mxu0
    %vm140 = vcmp.gt.f32.partialorder %v135, 0.0
    %vm141 = vcmp.gt.f32.partialorder %v138, 0.0
    %v142 = vstv %s94
    %v143 = vmul.f32 %v142, %v135
    %v144 = vmul.f32 %v142, %v138
    %v145 = vsel %vm140, %v135, %v143
    %v146 = vsel %vm141, %v138, %v144
    %v147 = vld [vmem:[#allocation8] sm:$0xff]
    %v148 = vld [vmem:[#allocation8 + $0x8] sm:$0xff]
    %v149 = vld [vmem:[#allocation8 + $0x10] sm:$0xff]
    %v150 = vld [vmem:[#allocation8 + $0x18] sm:$0xff]
    %v151 = vld [vmem:[#allocation8 + $0x20] sm:$0xff]
    %v152 = vld [vmem:[#allocation8 + $0x28] sm:$0xff]
    %v153 = vld [vmem:[#allocation8 + $0x30] sm:$0xff]
    %v154 = vld [vmem:[#allocation8 + $0x38] sm:$0xff]
    %v155 = vld [vmem:[#allocation8 + $0x40] sm:$0xff]
    %v156 = vld [vmem:[#allocation8 + $0x48] sm:$0xff]
    %v157 = vld [vmem:[#allocation8 + $0x50] sm:$0xff]
    %v158 = vld [vmem:[#allocation8 + $0x58] sm:$0xff]
    %v159 = vld [vmem:[#allocation8 + $0x60] sm:$0xff]
    %v160 = vld [vmem:[#allocation8 + $0x68] sm:$0xff]
    %v161 = vld [vmem:[#allocation8 + $0x70] sm:$0xff]
    %v162 = vld [vmem:[#allocation8 + $0x78] sm:$0xff]
    %v163 = vld [vmem:[%s5] sm:$0x1]
    %v165 = vperm.slane %v163, 0
    %167 = vmatpush.msra.mxu0 %v162
    %168 = vmatpush.msra.mxu0 %v161
    %169 = vmatpush.msra.mxu0 %v160
    %170 = vmatpush.msra.mxu0 %v159
    %171 = vmatpush.msra.mxu0 %v158
    %172 = vmatpush.msra.mxu0 %v157
    %173 = vmatpush.msra.mxu0 %v156
    %174 = vmatpush.msra.mxu0 %v155
    %175 = vmatpush.msra.mxu0 %v154
    %176 = vmatpush.msra.mxu0 %v153
    %177 = vmatpush.msra.mxu0 %v152
    %178 = vmatpush.msra.mxu0 %v151
    %179 = vmatpush.msra.mxu0 %v150
    %180 = vmatpush.msra.mxu0 %v149
    %181 = vmatpush.msra.mxu0 %v148
    %182 = vmatpush.msra.mxu0 %v147
    %183 = vmatmul.f32.gmra.mxu0 %v145
    %v184 = vpop.f32.mrf.mxu0
    %v185 = vadd.f32 %v165, %v184
    %186 = vmatmul.f32.gmra.mxu0 %v146
    %v187 = vpop.f32.mrf.mxu0
    %v188 = vadd.f32 %v165, %v187
    %189 = vdwg.mxu0
    %vm190 = vcmp.gt.f32.partialorder %v185, 0.0
    %vm191 = vcmp.gt.f32.partialorder %v188, 0.0
    %v192 = vmul.f32 %v142, %v185
    %v193 = vmul.f32 %v142, %v188
    %v194 = vsel %vm190, %v185, %v192
    %v195 = vsel %vm191, %v188, %v193
    %v196 = vld [vmem:[#allocation9] sm:$0xff]
    %v197 = vld [vmem:[#allocation9 + $0x8] sm:$0xff]
    %v198 = vld [vmem:[#allocation9 + $0x10] sm:$0xff]
    %v199 = vld [vmem:[#allocation9 + $0x18] sm:$0xff]
    %v200 = vld [vmem:[#allocation9 + $0x20] sm:$0xff]
    %v201 = vld [vmem:[#allocation9 + $0x28] sm:$0xff]
    %v202 = vld [vmem:[#allocation9 + $0x30] sm:$0xff]
    %v203 = vld [vmem:[#allocation9 + $0x38] sm:$0xff]
    %v204 = vld [vmem:[#allocation9 + $0x40] sm:$0xff]
    %v205 = vld [vmem:[#allocation9 + $0x48] sm:$0xff]
    %v206 = vld [vmem:[#allocation9 + $0x50] sm:$0xff]
    %v207 = vld [vmem:[#allocation9 + $0x58] sm:$0xff]
    %v208 = vld [vmem:[#allocation9 + $0x60] sm:$0xff]
    %v209 = vld [vmem:[#allocation9 + $0x68] sm:$0xff]
    %v210 = vld [vmem:[#allocation9 + $0x70] sm:$0xff]
    %v211 = vld [vmem:[#allocation9 + $0x78] sm:$0xff]
    %v212 = vld [vmem:[%s7] sm:$0x1]
    %v214 = vperm.slane %v212, 0
    %216 = vmatpush.msra.mxu0 %v211
    %217 = vmatpush.msra.mxu0 %v210
    %218 = vmatpush.msra.mxu0 %v209
    %219 = vmatpush.msra.mxu0 %v208
    %220 = vmatpush.msra.mxu0 %v207
    %221 = vmatpush.msra.mxu0 %v206
    %222 = vmatpush.msra.mxu0 %v205
    %223 = vmatpush.msra.mxu0 %v204
    %224 = vmatpush.msra.mxu0 %v203
    %225 = vmatpush.msra.mxu0 %v202
    %226 = vmatpush.msra.mxu0 %v201
    %227 = vmatpush.msra.mxu0 %v200
    %228 = vmatpush.msra.mxu0 %v199
    %229 = vmatpush.msra.mxu0 %v198
    %230 = vmatpush.msra.mxu0 %v197
    %231 = vmatpush.msra.mxu0 %v196
    %232 = vmatmul.f32.gmra.mxu0 %v194
    %v233 = vpop.f32.mrf.mxu0
    %v234 = vadd.f32 %v214, %v233
    %235 = vmatmul.f32.gmra.mxu0 %v195
    %v236 = vpop.f32.mrf.mxu0
    %v237 = vadd.f32 %v214, %v236
    %238 = vdwg.mxu0
    %239 = vst [vmem:[#allocation11] sm:$0xff] %v234
    %240 = vst [vmem:[#allocation11 + $0x8] sm:$0xff] %v237
    // Predicated region
    $region50: #{tpu_custom_call.1} parent=1 // pred_check
      _
    $region51: #{tpu_custom_call.1} parent=1 // pred_check_branch
      %242 = sbr.rel (0) target = $region53
    $region52: #{tpu_custom_call.1} parent=1 // pred_region
      %244 = vsyncadd [#allocation5], 0
      %s245 = sshll.u32 [#allocation11], 4
      %s246 = int_to_ptr.vmem [resolvable:$true] %s245
      %s247 = sshll.u32 %s8, 4
      %s248 = int_to_ptr.hbm [resolvable:$true] %s247
      %253 = dma.vmem_to_hbm [thread:$0]  %s246, 256, %s248, [#allocation5], 128, 128, 8
    $region53: #{tpu_custom_call.1} parent=1 // pred_fallthru
      _
    // Predicated region
    $region54: #{tpu_custom_call.1} parent=1 // pred_check
      _
    $region55: #{tpu_custom_call.1} parent=1 // pred_check_branch
      %255 = sbr.rel (0) target = $region57
    $region56: #{tpu_custom_call.1} parent=1 // pred_region
      %257 = dma.done [#allocation5], 256
    $region57: #{tpu_custom_call.1} parent=1 // pred_fallthru
      _
    %258 = vsyncpa [#allocation4], 1
    %259 = vsyncpa [#allocation7], 1
    %260 = vsyncpa [#allocation10], 1
    %261 = vsyncpa [#allocation5], 1

</llo_original>
